<compile_context>
chip_gen: v5e
topology: v5e:2x2
jax: 0.10.0
libtpu: 0.0.40
codegen_flags: <defaults>
</compile_context>

<pallas_src>
import jax
import jax.numpy as jnp
from jax import lax
from jax.experimental import pallas as pl
from jax.experimental.pallas import tpu as pltpu


_LANE = 128


def _round_up(x, m):
    return (x + m - 1) // m * m


def _skipcnn_kernel(scal_ref, x_ref, w_ref, csum_ref, b_ref, o_ref):
    # scal_ref : SMEM f32[4] = [gamma, beta, eps, 1/(N*fan_in)]
    # x_ref    : VMEM (N, fan_in)     raw (un-normalized) input, full, resident
    # w_ref    : VMEM (fan_in, fc_pad) W^T zero-padded to 128 output lanes
    # csum_ref : VMEM (1, fc_pad)     column sums of padded W^T
    # b_ref    : VMEM (1, fc_pad)     zero-padded bias
    # o_ref    : VMEM (tm, fc_pad)    lane-dense output tile for row block i
    tm = o_ref.shape[0]
    row0 = pl.multiple_of(pl.program_id(0) * tm, tm)

    # MXU first: matmul on the *raw* rows; BatchNorm is applied as an affine
    # epilogue on the small (tm, fc_pad) result, so the MXU push overlaps with
    # the XLU reductions / EUP rsqrt instead of serializing behind them.
    y0 = jnp.dot(x_ref[pl.ds(row0, tm), :], w_ref[...],
                 preferred_element_type=jnp.float32)

    # Fused single-pass batch statistics over the WHOLE resident input:
    # BatchNorm2d(1) training-mode semantics (biased variance over all N*H*W
    # elements of the single channel).
    xf = x_ref[...]
    s1 = jnp.sum(xf)
    s2 = jnp.sum(xf * xf)
    inv_n = scal_ref[3]
    mean = s1 * inv_n
    var = s2 * inv_n - mean * mean
    gamma = scal_ref[0]
    beta = scal_ref[1]
    eps = scal_ref[2]
    scale = gamma * lax.rsqrt(var + eps)
    shift = beta - scale * mean

    # (scale*x + shift) @ W^T + b  ==  scale*(x @ W^T) + shift*colsum(W^T) + b
    o_ref[...] = (scale * y0 + shift * csum_ref[...] + b_ref[...]
                  ).astype(o_ref.dtype)


def prepare_skipcnn_params(w, b, gamma, beta, eps=1e-5):
    """One-time parameter preprocessing (transpose + 128-lane zero padding).

    w: (fc_out, fan_in) Linear weight; b: (fc_out,) Linear bias.
    """
    fc_out, fan_in = w.shape
    fc_pad = _round_up(fc_out, _LANE)
    w_pad = jnp.zeros((fan_in, fc_pad), jnp.float32).at[:, :fc_out].set(
        w.T.astype(jnp.float32))
    b_pad = jnp.zeros((1, fc_pad), jnp.float32).at[0, :fc_out].set(
        b.astype(jnp.float32))
    colsum = jnp.sum(w_pad, axis=0, keepdims=True)            # (1, fc_pad)
    return {
        "w_pad": w_pad,
        "b_pad": b_pad,
        "colsum": colsum,
        "gamma": float(gamma),
        "beta": float(beta),
        "eps": float(eps),
        "fc_out": fc_out,
    }


def skip_cnn_forward(x_nchw, params, row_block=128):
    """x_nchw: (N, 1, H, W) float32. Returns (N, fc_out) float32."""
    N = x_nchw.shape[0]
    fan_in = x_nchw.shape[1] * x_nchw.shape[2] * x_nchw.shape[3]
    w_pad, b_pad, colsum = params["w_pad"], params["b_pad"], params["colsum"]
    fc_pad = w_pad.shape[1]
    assert w_pad.shape[0] == fan_in

    x2 = x_nchw.reshape(N, fan_in).astype(jnp.float32)   # glue: x.view(-1, fan_in)

    # Row tiling: one 128-row block per grid step (sharded across TensorCores
    # on v7x via "parallel"); otherwise a single full-array block.
    tm = row_block if (N % row_block == 0 and N >= row_block) else N
    nb = N // tm

    scalars = jnp.array(
        [params["gamma"], params["beta"], params["eps"], 1.0 / (N * fan_in)],
        dtype=jnp.float32)                                # flat 1-D SMEM f32[4]

    out_pad = pl.pallas_call(
        _skipcnn_kernel,
        out_shape=jax.ShapeDtypeStruct((N, fc_pad), jnp.float32),
        grid=(nb,),
        in_specs=[
            pl.BlockSpec(memory_space=pltpu.SMEM),               # scalars
            pl.BlockSpec((N, fan_in), lambda i: (0, 0)),         # x (resident)
            pl.BlockSpec((fan_in, fc_pad), lambda i: (0, 0)),    # W^T padded
            pl.BlockSpec((1, fc_pad), lambda i: (0, 0)),         # colsum(W^T)
            pl.BlockSpec((1, fc_pad), lambda i: (0, 0)),         # bias padded
        ],
        out_specs=pl.BlockSpec((tm, fc_pad), lambda i: (i, 0)),  # lane-dense
        compiler_params=pltpu.CompilerParams(
            dimension_semantics=("parallel",)),
    )(scalars, x2, w_pad, colsum, b_pad)

    return out_pad[:, :params["fc_out"]]                  # drop zero pad lanes


def _reference(x_nchw, gamma, beta, w, b, eps=1e-5):
    # Pure-JAX reference mirroring PyTorch training-mode forward.
    N = x_nchw.shape[0]
    fan_in = x_nchw.shape[1] * x_nchw.shape[2] * x_nchw.shape[3]
    mean = jnp.mean(x_nchw)
    var = jnp.mean((x_nchw - mean) ** 2)
    xn = (x_nchw - mean) / jnp.sqrt(var + eps) * gamma + beta
    return xn.reshape(N, fan_in) @ w.T + b


if __name__ == "__main__":
    # Module hyperparameters (small, consistent with the forward):
    cnn_seg_length = 16
    ms_n_mels = 8
    fan_in = cnn_seg_length * ms_n_mels                  # 128
    fc_out_h = 32
    batch = 256   # many mel-spectrogram segments batched into ONE pallas_call

    key = jax.random.PRNGKey(0)
    kx, kw, kb = jax.random.split(key, 3)

    # Input: NCHW with C=1 (mel-spectrogram segments).
    x = jax.random.normal(kx, (batch, 1, cnn_seg_length, ms_n_mels), jnp.float32)

    # Deterministic synthetic parameters.
    bound = 1.0 / (fan_in ** 0.5)
    w = jax.random.uniform(kw, (fc_out_h, fan_in), jnp.float32, -bound, bound)
    b = jax.random.uniform(kb, (fc_out_h,), jnp.float32, -bound, bound)
    gamma = 1.0   # BatchNorm2d default affine weight
    beta = 0.0    # BatchNorm2d default affine bias

    params = prepare_skipcnn_params(w, b, gamma, beta)   # once, not per call
    out = skip_cnn_forward(x, params)
    out = jax.block_until_ready(out)

    ref = _reference(x, gamma, beta, w, b)
    assert out.shape == (batch, fc_out_h)
    assert jnp.allclose(out, ref, atol=1e-3, rtol=1e-3), "mismatch vs reference"

    print("KERNEL_OK")
</pallas_src>

<mosaic_0001>
module attributes {stable_mosaic.version = 11 : i64} {
  func.func @_skipcnn_kernel(%arg0: i32, %arg1: memref<4xf32, #tpu.memory_space<smem>>, %arg2: memref<256x128xf32, #tpu.memory_space<vmem>>, %arg3: memref<128x128xf32, #tpu.memory_space<vmem>>, %arg4: memref<1x128xf32, #tpu.memory_space<vmem>>, %arg5: memref<1x128xf32, #tpu.memory_space<vmem>>, %arg6: memref<128x128xf32, #tpu.memory_space<vmem>>) attributes {dimension_semantics = [#tpu.dimension_semantics<parallel>], iteration_bounds = array<i64: 2>, scalar_prefetch = 0 : i64, scratch_operands = 0 : i64, tpu.core_type = #tpu.core_type<tc>, window_params = [{transform_indices = @transform_0, window_bounds = array<i64: 4>}, {pipeline_mode = #tpu.pipeline_mode<synchronous>, transform_indices = @transform_1, window_bounds = array<i64: 256, 128>}, {pipeline_mode = #tpu.pipeline_mode<synchronous>, transform_indices = @transform_2, window_bounds = array<i64: 128, 128>}, {pipeline_mode = #tpu.pipeline_mode<synchronous>, transform_indices = @transform_3, window_bounds = array<i64: 1, 128>}, {pipeline_mode = #tpu.pipeline_mode<synchronous>, transform_indices = @transform_4, window_bounds = array<i64: 1, 128>}, {transform_indices = @transform_5, window_bounds = array<i64: 128, 128>}]} {
    %c128_i32 = arith.constant 128 : i32
    %0 = arith.muli %arg0, %c128_i32 : i32
    %1 = tpu.assume_multiple %0, 128 : i32
    %2 = arith.index_cast %1 : i32 to index
    %c0 = arith.constant 0 : index
    %3 = vector.load %arg2[%2, %c0] : memref<256x128xf32, #tpu.memory_space<vmem>>, vector<128x128xf32>
    %c0_0 = arith.constant 0 : index
    %c0_1 = arith.constant 0 : index
    %4 = vector.load %arg3[%c0_0, %c0_1] : memref<128x128xf32, #tpu.memory_space<vmem>>, vector<128x128xf32>
    %cst = arith.constant dense<0.000000e+00> : vector<128x128xf32>
    %5 = tpu.matmul %3, %4, %cst {dimension_numbers = #tpu.dot_dimension_numbers<[1], [0], [0], [1], [0, 0, 1, 1], [], []>} : vector<128x128xf32>, vector<128x128xf32>, vector<128x128xf32> -> vector<128x128xf32>
    %c0_2 = arith.constant 0 : index
    %c0_3 = arith.constant 0 : index
    %6 = vector.load %arg2[%c0_2, %c0_3] : memref<256x128xf32, #tpu.memory_space<vmem>>, vector<256x128xf32>
    %7 = vector.shape_cast %6 : vector<256x128xf32> to vector<1x256x128xf32>
    %cst_4 = arith.constant dense<0.000000e+00> : vector<1xf32>
    %8 = vector.multi_reduction <add>, %7, %cst_4 [1, 2] : vector<1x256x128xf32> to vector<1xf32>
    %9 = vector.shape_cast %8 : vector<1xf32> to vector<1x1x1xf32>
    %10 = vector.extract %9[0, 0, 0] : f32 from vector<1x1x1xf32>
    %11 = arith.mulf %6, %6 : vector<256x128xf32>
    %12 = vector.shape_cast %11 : vector<256x128xf32> to vector<1x256x128xf32>
    %cst_5 = arith.constant dense<0.000000e+00> : vector<1xf32>
    %13 = vector.multi_reduction <add>, %12, %cst_5 [1, 2] : vector<1x256x128xf32> to vector<1xf32>
    %14 = vector.shape_cast %13 : vector<1xf32> to vector<1x1x1xf32>
    %15 = vector.extract %14[0, 0, 0] : f32 from vector<1x1x1xf32>
    %c3 = arith.constant 3 : index
    %16 = memref.load %arg1[%c3] : memref<4xf32, #tpu.memory_space<smem>>
    %17 = arith.mulf %10, %16 : f32
    %18 = arith.mulf %15, %16 : f32
    %19 = arith.mulf %17, %17 : f32
    %20 = arith.subf %18, %19 : f32
    %c0_6 = arith.constant 0 : index
    %21 = memref.load %arg1[%c0_6] : memref<4xf32, #tpu.memory_space<smem>>
    %c1 = arith.constant 1 : index
    %22 = memref.load %arg1[%c1] : memref<4xf32, #tpu.memory_space<smem>>
    %c2 = arith.constant 2 : index
    %23 = memref.load %arg1[%c2] : memref<4xf32, #tpu.memory_space<smem>>
    %24 = arith.addf %20, %23 : f32
    %25 = math.rsqrt %24 : f32
    %26 = arith.mulf %21, %25 : f32
    %27 = arith.mulf %26, %17 : f32
    %28 = arith.subf %22, %27 : f32
    %29 = vector.broadcast %26 : f32 to vector<128x128xf32>
    %30 = arith.mulf %29, %5 : vector<128x128xf32>
    %c0_7 = arith.constant 0 : index
    %c0_8 = arith.constant 0 : index
    %31 = vector.load %arg4[%c0_7, %c0_8] : memref<1x128xf32, #tpu.memory_space<vmem>>, vector<1x128xf32>
    %32 = vector.broadcast %28 : f32 to vector<1x128xf32>
    %33 = arith.mulf %32, %31 : vector<1x128xf32>
    %34 = vector.broadcast %33 : vector<1x128xf32> to vector<128x128xf32>
    %35 = arith.addf %30, %34 : vector<128x128xf32>
    %c0_9 = arith.constant 0 : index
    %c0_10 = arith.constant 0 : index
    %36 = vector.load %arg5[%c0_9, %c0_10] : memref<1x128xf32, #tpu.memory_space<vmem>>, vector<1x128xf32>
    %37 = vector.broadcast %36 : vector<1x128xf32> to vector<128x128xf32>
    %38 = arith.addf %35, %37 : vector<128x128xf32>
    %c0_11 = arith.constant 0 : index
    %c0_12 = arith.constant 0 : index
    %39 = vector.load %arg6[%c0_11, %c0_12] : memref<128x128xf32, #tpu.memory_space<vmem>>, vector<128x128xf32>
    tpu.vector_store %arg6[%c0_11, %c0_12], %38 {strides = array<i32>} : memref<128x128xf32, #tpu.memory_space<vmem>>, vector<128x128xf32>,
    return
  }
  func.func @transform_0(%arg0: i32) -> i32 {
    %c0_i32 = arith.constant 0 : i32
    %c0_i32_0 = arith.constant 0 : i32
    return %c0_i32 : i32
  }
  func.func @transform_1(%arg0: i32) -> (i32, i32) {
    %c0_i32 = arith.constant 0 : i32
    %c0_i32_0 = arith.constant 0 : i32
    %c0_i32_1 = arith.constant 0 : i32
    return %c0_i32, %c0_i32_0 : i32, i32
  }
  func.func @transform_2(%arg0: i32) -> (i32, i32) {
    %c0_i32 = arith.constant 0 : i32
    %c0_i32_0 = arith.constant 0 : i32
    %c0_i32_1 = arith.constant 0 : i32
    return %c0_i32, %c0_i32_0 : i32, i32
  }
  func.func @transform_3(%arg0: i32) -> (i32, i32) {
    %c0_i32 = arith.constant 0 : i32
    %c0_i32_0 = arith.constant 0 : i32
    %c0_i32_1 = arith.constant 0 : i32
    return %c0_i32, %c0_i32_0 : i32, i32
  }
  func.func @transform_4(%arg0: i32) -> (i32, i32) {
    %c0_i32 = arith.constant 0 : i32
    %c0_i32_0 = arith.constant 0 : i32
    %c0_i32_1 = arith.constant 0 : i32
    return %c0_i32, %c0_i32_0 : i32, i32
  }
  func.func @transform_5(%arg0: i32) -> (i32, i32) {
    %c0_i32 = arith.constant 0 : i32
    %c0_i32_0 = arith.constant 0 : i32
    return %arg0, %c0_i32 : i32, i32
  }
}

</mosaic_0001>

<llo_original>
// kernel: tpu_custom_call.1
$region0: #{tpu_custom_call.1}
  #allocation0 [shape = 'u32[]', space=smem, size = 0x4, offset = 0x4, fixed_abs, tag = 'smem constant byte address 0x4 - core index']
  #allocation1 [shape = 'u32[72,128]{1,0:T(1,128)}', space=vmem, size = 0x9000, scoped, tag = 'internal scratch']
  %s0 = inlined_call_operand.hbm [shape: f32[4], index: 0, kind: input, shape index: {}]
  %s1 = inlined_call_operand.hbm [shape: f32[256,128], index: 1, kind: input, shape index: {}]
  %s2 = inlined_call_operand.hbm [shape: f32[128,128], index: 2, kind: input, shape index: {}]
  %s3 = inlined_call_operand.vmem [shape: f32[1,128], index: 3, kind: input, shape index: {}]
  %s4 = inlined_call_operand.vmem [shape: f32[1,128], index: 4, kind: input, shape index: {}]
  %s5 = inlined_call_operand.hbm [shape: f32[256,128], index: 5, kind: output, shape index: {}]
  %s6 = sld [smem:[#allocation0]]
  $region65: #{tpu_custom_call.1} parent=0
    _
  %s8 = ssub.s32 1, %s6
  %s9 = scalar_select 0, %s8, %s6
  $region1: #{tpu_custom_call.1} parent=0
    #allocation2 [shape = 'u8[512]{0}', space=smem, size = 0x200, scoped, tag = 'input window, operand 0, single buffered']
    #allocation3 [shape = 's32[2]{0}', space=sflag, size = 0x8, scoped, tag = 'scoped memory for tpu_custom_call.1']
    #allocation4 [shape = 's32[2]{0}', space=sflag, size = 0x8, scoped, tag = 'scoped memory for tpu_custom_call.1']
    #allocation5 [shape = 's32[2]{0}', space=sflag, size = 0x8, scoped, tag = 'scoped memory for tpu_custom_call.1']
    #allocation6 [shape = 'u8[131072]{0}', space=vmem, size = 0x20000, scoped, tag = 'input window, operand 1, single buffered']
    #allocation7 [shape = 'u8[65536]{0}', space=vmem, size = 0x10000, scoped, tag = 'input window, operand 2, single buffered']
    #allocation8 [shape = 's32[1]{0}', space=sflag, size = 0x4, scoped, tag = 'scoped memory for tpu_custom_call.1']
    #allocation9 [shape = 'u8[131072]{0}', space=vmem, size = 0x20000, scoped, tag = 'output window, operand 0']
    %10 = vsyncpa [#allocation5], 0
    %11 = vsyncpa [#allocation3], 0
    %12 = vsyncpa [#allocation8], 0
    %13 = vsyncpa [#allocation4], 0
    %s14 = scalar_lea.sflag [#allocation4], 1
    %15 = vsyncpa %s14, 0
    loop: start=0, step=1, limit=4
    $region2: #{tpu_custom_call.1} parent=1 // loop_pre_header
      _
    $region3: #{tpu_custom_call.1} parent=1 // loop_header
      %s17 = sphi 0, %s21
      %p18 = scmp.ge.s32.totalorder %s17, 4
      %s25 = sphi 0, %s25
      %s27 = sphi 0, %s25
      %s28 = sphi 0, %s27
      %s42 = sphi 0, %s28
      %s46 = sphi 0, %s46
      %s48 = sphi 0, %s46
      %s49 = sphi 0, %s48
      %s63 = sphi 0, %s49
      %s67 = sphi 0, %s67
      %s69 = sphi 0, %s67
      %s70 = sphi 0, %s69
      %s84 = sphi 0, %s70
      %s88 = sphi 0, %s88
      %s90 = sphi 0, %s88
      %s91 = sphi 0, %s90
      %s105 = sphi 0, %s91
      %s109 = sphi 0, %s109
      %s111 = sphi 0, %s109
      %s112 = sphi 0, %s111
      %s126 = sphi 0, %s112
      %s132 = sphi 0, %s134
      %s135 = sphi 0, %s132
      %s136 = sphi 0, %s135
      %s152 = sphi 0, %s136
    $region4: #{tpu_custom_call.1} parent=1 // loop_header_branch
      %20 = sbr.rel (%p18) target = $region8
    $region5: #{tpu_custom_call.1} parent=1 // loop_body
      %s22 = ssub.s32 %s17, 1
      %s23 = ssub.s32 %s17, 2
      %s24 = sadd.s32 %s17, 1
      %s26 = sadd.s32 %s25, 1
      %p29 = scmp.eq.s32.totalorder %s17, 1
      %p30 = scmp.ne.s32.totalorder %s25, %s27
      %p31 = scmp.eq.s32.totalorder %s17, 0
      %p32 = por %p30, %p31
      %p33 = scmp.ne.s32.totalorder %s25, %s27
      %p34 = scmp.eq.s32.totalorder %s22, 1
      %p35 = por %p33, %p34
      %p36 = scmp.ne.s32.totalorder %s27, %s28
      %p37 = scmp.eq.s32.totalorder %s22, 0
      %p38 = por %p36, %p37
      %p39 = scmp.ne.s32.totalorder %s27, %s28
      %p40 = scmp.eq.s32.totalorder %s23, 1
      %p41 = por %p39, %p40
      %p43 = scmp.ne.s32.totalorder %s28, %s42
      %p44 = scmp.eq.s32.totalorder %s23, 0
      %p45 = por %p43, %p44
      %s47 = sadd.s32 %s46, 1
      %p50 = scmp.eq.s32.totalorder %s17, 1
      %p51 = scmp.ne.s32.totalorder %s46, %s48
      %p52 = scmp.eq.s32.totalorder %s17, 0
      %p53 = por %p51, %p52
      %p54 = scmp.ne.s32.totalorder %s46, %s48
      %p55 = scmp.eq.s32.totalorder %s22, 1
      %p56 = por %p54, %p55
      %p57 = scmp.ne.s32.totalorder %s48, %s49
      %p58 = scmp.eq.s32.totalorder %s22, 0
      %p59 = por %p57, %p58
      %p60 = scmp.ne.s32.totalorder %s48, %s49
      %p61 = scmp.eq.s32.totalorder %s23, 1
      %p62 = por %p60, %p61
      %p64 = scmp.ne.s32.totalorder %s49, %s63
      %p65 = scmp.eq.s32.totalorder %s23, 0
      %p66 = por %p64, %p65
      %s68 = sadd.s32 %s67, 1
      %p71 = scmp.eq.s32.totalorder %s17, 1
      %p72 = scmp.ne.s32.totalorder %s67, %s69
      %p73 = scmp.eq.s32.totalorder %s17, 0
      %p74 = por %p72, %p73
      %p75 = scmp.ne.s32.totalorder %s67, %s69
      %p76 = scmp.eq.s32.totalorder %s22, 1
      %p77 = por %p75, %p76
      %p78 = scmp.ne.s32.totalorder %s69, %s70
      %p79 = scmp.eq.s32.totalorder %s22, 0
      %p80 = por %p78, %p79
      %p81 = scmp.ne.s32.totalorder %s69, %s70
      %p82 = scmp.eq.s32.totalorder %s23, 1
      %p83 = por %p81, %p82
      %p85 = scmp.ne.s32.totalorder %s70, %s84
      %p86 = scmp.eq.s32.totalorder %s23, 0
      %p87 = por %p85, %p86
      %s89 = sadd.s32 %s88, 1
      %p92 = scmp.eq.s32.totalorder %s17, 1
      %p93 = scmp.ne.s32.totalorder %s88, %s90
      %p94 = scmp.eq.s32.totalorder %s17, 0
      %p95 = por %p93, %p94
      %p96 = scmp.ne.s32.totalorder %s88, %s90
      %p97 = scmp.eq.s32.totalorder %s22, 1
      %p98 = por %p96, %p97
      %p99 = scmp.ne.s32.totalorder %s90, %s91
      %p100 = scmp.eq.s32.totalorder %s22, 0
      %p101 = por %p99, %p100
      %p102 = scmp.ne.s32.totalorder %s90, %s91
      %p103 = scmp.eq.s32.totalorder %s23, 1
      %p104 = por %p102, %p103
      %p106 = scmp.ne.s32.totalorder %s91, %s105
      %p107 = scmp.eq.s32.totalorder %s23, 0
      %p108 = por %p106, %p107
      %s110 = sadd.s32 %s109, 1
      %p113 = scmp.eq.s32.totalorder %s17, 1
      %p114 = scmp.ne.s32.totalorder %s109, %s111
      %p115 = scmp.eq.s32.totalorder %s17, 0
      %p116 = por %p114, %p115
      %p117 = scmp.ne.s32.totalorder %s109, %s111
      %p118 = scmp.eq.s32.totalorder %s22, 1
      %p119 = por %p117, %p118
      %p120 = scmp.ne.s32.totalorder %s111, %s112
      %p121 = scmp.eq.s32.totalorder %s22, 0
      %p122 = por %p120, %p121
      %p123 = scmp.ne.s32.totalorder %s111, %s112
      %p124 = scmp.eq.s32.totalorder %s23, 1
      %p125 = por %p123, %p124
      %p127 = scmp.ne.s32.totalorder %s112, %s126
      %p128 = scmp.eq.s32.totalorder %s23, 0
      %p129 = por %p127, %p128
      %s130 = ssub.s32 %s17, %s24
      %p131 = scmp.eq.s32.totalorder %s130, 0
      %s133 = sadd.s32 %s132, 1
      %s134 = scalar_select %p131, %s132, %s133
      %p137 = pneg %p131
      %p138 = scmp.eq.s32.totalorder %s17, 1
      %p139 = por %p137, %p138
      %p140 = scmp.ne.s32.totalorder %s132, %s135
      %p141 = scmp.eq.s32.totalorder %s17, 0
      %p142 = por %p140, %p141
      %p143 = scmp.ne.s32.totalorder %s132, %s135
      %p144 = scmp.eq.s32.totalorder %s22, 1
      %p145 = por %p143, %p144
      %p146 = scmp.ne.s32.totalorder %s135, %s136
      %p147 = scmp.eq.s32.totalorder %s22, 0
      %p148 = por %p146, %p147
      %p149 = scmp.ne.s32.totalorder %s135, %s136
      %p150 = scmp.eq.s32.totalorder %s23, 1
      %p151 = por %p149, %p150
      %p153 = scmp.ne.s32.totalorder %s136, %s152
      %p154 = scmp.eq.s32.totalorder %s23, 0
      %p155 = por %p153, %p154
      %p156 = scmp.le.s32.totalorder 1, %s17
      %p157 = scmp.lt.s32.totalorder %s17, 3
      %p158 = pnand %p156, %p157
      %p159 = pneg %p158
      // Predicated region
      $region9: #{tpu_custom_call.1} parent=5 // pred_check
        _
      $region10: #{tpu_custom_call.1} parent=5 // pred_check_branch
        %161 = sbr.rel (%p158) target = $region12
      $region11: #{tpu_custom_call.1} parent=5 // pred_region
        %s162 = ssub.s32 %s17, 1
        // Predicated region
        $region13: #{tpu_custom_call.1} parent=11 // pred_check
          %p163 = pneg %p38
        $region14: #{tpu_custom_call.1} parent=11 // pred_check_branch
          %165 = sbr.rel (%p163) target = $region16
        $region15: #{tpu_custom_call.1} parent=11 // pred_region
          %167 = vsyncadd [#allocation5], 0
          %s169 = sshll.u32 %s0, 4
          %s170 = int_to_ptr.hbm [resolvable:$true] %s169
          %172 = dma.hbm_to_smem %s170, 16, [#allocation2], [#allocation5]
        $region16: #{tpu_custom_call.1} parent=11 // pred_fallthru
          _
        // Predicated region
        $region17: #{tpu_custom_call.1} parent=11 // pred_check
          %p173 = pneg %p59
        $region18: #{tpu_custom_call.1} parent=11 // pred_check_branch
          %175 = sbr.rel (%p173) target = $region20
        $region19: #{tpu_custom_call.1} parent=11 // pred_region
          %177 = vsyncadd [#allocation3], 0
          %s178 = sshll.u32 %s1, 4
          %s179 = int_to_ptr.hbm [resolvable:$true] %s178
          %s180 = sshll.u32 [#allocation6], 4
          %s181 = int_to_ptr.vmem [resolvable:$true] %s180
          %186 = dma.hbm_to_vmem [thread:$0]  %s179, 4096, %s181, [#allocation3], 128, 128, 8
        $region20: #{tpu_custom_call.1} parent=11 // pred_fallthru
          _
        // Predicated region
        $region21: #{tpu_custom_call.1} parent=11 // pred_check
          %p187 = pneg %p80
        $region22: #{tpu_custom_call.1} parent=11 // pred_check_branch
          %189 = sbr.rel (%p187) target = $region24
        $region23: #{tpu_custom_call.1} parent=11 // pred_region
          %191 = vsyncadd [#allocation8], 0
          %s192 = sshll.u32 %s2, 4
          %s193 = int_to_ptr.hbm [resolvable:$true] %s192
          %s194 = sshll.u32 [#allocation7], 4
          %s195 = int_to_ptr.vmem [resolvable:$true] %s194
          %200 = dma.hbm_to_vmem [thread:$0]  %s193, 2048, %s195, [#allocation8], 128, 128, 8
        $region24: #{tpu_custom_call.1} parent=11 // pred_fallthru
          _
        // Predicated region
        $region25: #{tpu_custom_call.1} parent=11 // pred_check
          %p201 = pneg %p101
        $region26: #{tpu_custom_call.1} parent=11 // pred_check_branch
          %203 = sbr.rel (%p201) target = $region28
        $region27: #{tpu_custom_call.1} parent=11 // pred_region
          _
        $region28: #{tpu_custom_call.1} parent=11 // pred_fallthru
          _
        // Predicated region
        $region29: #{tpu_custom_call.1} parent=11 // pred_check
          %p204 = pneg %p122
        $region30: #{tpu_custom_call.1} parent=11 // pred_check_branch
          %206 = sbr.rel (%p204) target = $region32
        $region31: #{tpu_custom_call.1} parent=11 // pred_region
          _
        $region32: #{tpu_custom_call.1} parent=11 // pred_fallthru
          _
      $region12: #{tpu_custom_call.1} parent=5 // pred_fallthru
        _
      %p207 = scmp.lt.s32.totalorder %s17, 2
      // Predicated region
      $region33: #{tpu_custom_call.1} parent=5 // pred_check
        %p208 = pneg %p207
      $region34: #{tpu_custom_call.1} parent=5 // pred_check_branch
        %210 = sbr.rel (%p208) target = $region36
      $region35: #{tpu_custom_call.1} parent=5 // pred_region
        _
      $region36: #{tpu_custom_call.1} parent=5 // pred_fallthru
        _
      %p211 = scmp.le.s32.totalorder 1, %s17
      %p212 = scmp.lt.s32.totalorder %s17, 3
      %p213 = pnand %p211, %p212
      %p214 = pneg %p213
      // Predicated region
      $region37: #{tpu_custom_call.1} parent=5 // pred_check
        _
      $region38: #{tpu_custom_call.1} parent=5 // pred_check_branch
        %216 = sbr.rel (%p213) target = $region40
      $region39: #{tpu_custom_call.1} parent=5 // pred_region
        %s217 = ssub.s32 %s17, 1
        // Predicated region
        $region41: #{tpu_custom_call.1} parent=39 // pred_check
          %p218 = pneg %p38
        $region42: #{tpu_custom_call.1} parent=39 // pred_check_branch
          %220 = sbr.rel (%p218) target = $region44
        $region43: #{tpu_custom_call.1} parent=39 // pred_region
          %222 = dma.done [#allocation5], 16
        $region44: #{tpu_custom_call.1} parent=39 // pred_fallthru
          _
        // Predicated region
        $region45: #{tpu_custom_call.1} parent=39 // pred_check
          %p223 = pneg %p59
        $region46: #{tpu_custom_call.1} parent=39 // pred_check_branch
          %225 = sbr.rel (%p223) target = $region48
        $region47: #{tpu_custom_call.1} parent=39 // pred_region
          %227 = dma.done [#allocation3], 4096
        $region48: #{tpu_custom_call.1} parent=39 // pred_fallthru
          _
        // Predicated region
        $region49: #{tpu_custom_call.1} parent=39 // pred_check
          %p228 = pneg %p80
        $region50: #{tpu_custom_call.1} parent=39 // pred_check_branch
          %230 = sbr.rel (%p228) target = $region52
        $region51: #{tpu_custom_call.1} parent=39 // pred_region
          %232 = dma.done [#allocation8], 2048
        $region52: #{tpu_custom_call.1} parent=39 // pred_fallthru
          _
        %233 = sfence
        %p234 = pneg %p38
        %p235 = pneg %p35
        %p236 = pneg %p59
        %p237 = pneg %p56
        %p238 = pneg %p80
        %p239 = pneg %p77
        %p240 = pneg %p101
        %p241 = pneg %p98
        %p242 = pneg %p122
        %p243 = pneg %p119
        %p244 = pneg %p148
        %p245 = pneg %p145
        %s246 = sand.u32 %s135, 1
        %s247 = scalar_lea.sflag [#allocation4], %s246
        %s248 = sand.u32 %s135, 1
        %s249 = smul.addr %s248, 128
        %s250 = scalar_lea.vmem [#allocation9], %s249
        %s251 = smul.u32 16, %s22
        %s252 = smul.u32 %s22, 128
        %s253 = scalar_lea.vmem [#allocation6], %s252
        %v254 = vld [vmem:[%s253] sm:$0xff]
        %v255 = vld [vmem:[%s253 + $0x8] sm:$0xff]
        %v256 = vld [vmem:[%s253 + $0x10] sm:$0xff]
        %v257 = vld [vmem:[%s253 + $0x18] sm:$0xff]
        %v258 = vld [vmem:[%s253 + $0x20] sm:$0xff]
        %v259 = vld [vmem:[%s253 + $0x28] sm:$0xff]
        %v260 = vld [vmem:[%s253 + $0x30] sm:$0xff]
        %v261 = vld [vmem:[%s253 + $0x38] sm:$0xff]
        %v262 = vld [vmem:[%s253 + $0x40] sm:$0xff]
        %v263 = vld [vmem:[%s253 + $0x48] sm:$0xff]
        %v264 = vld [vmem:[%s253 + $0x50] sm:$0xff]
        %v265 = vld [vmem:[%s253 + $0x58] sm:$0xff]
        %v266 = vld [vmem:[%s253 + $0x60] sm:$0xff]
        %v267 = vld [vmem:[%s253 + $0x68] sm:$0xff]
        %v268 = vld [vmem:[%s253 + $0x70] sm:$0xff]
        %v269 = vld [vmem:[%s253 + $0x78] sm:$0xff]
        %v270 = vld [vmem:[#allocation7] sm:$0xff]
        %v271 = vld [vmem:[#allocation7 + $0x8] sm:$0xff]
        %v272 = vld [vmem:[#allocation7 + $0x10] sm:$0xff]
        %v273 = vld [vmem:[#allocation7 + $0x18] sm:$0xff]
        %v274 = vld [vmem:[#allocation7 + $0x20] sm:$0xff]
        %v275 = vld [vmem:[#allocation7 + $0x28] sm:$0xff]
        %v276 = vld [vmem:[#allocation7 + $0x30] sm:$0xff]
        %v277 = vld [vmem:[#allocation7 + $0x38] sm:$0xff]
        %v278 = vld [vmem:[#allocation7 + $0x40] sm:$0xff]
        %v279 = vld [vmem:[#allocation7 + $0x48] sm:$0xff]
        %v280 = vld [vmem:[#allocation7 + $0x50] sm:$0xff]
        %v281 = vld [vmem:[#allocation7 + $0x58] sm:$0xff]
        %v282 = vld [vmem:[#allocation7 + $0x60] sm:$0xff]
        %v283 = vld [vmem:[#allocation7 + $0x68] sm:$0xff]
        %v284 = vld [vmem:[#allocation7 + $0x70] sm:$0xff]
        %v285 = vld [vmem:[#allocation7 + $0x78] sm:$0xff]
        %286 = vmatpush.msra.mxu0 %v285
        %287 = vmatpush.msra.mxu0 %v284
        %288 = vmatpush.msra.mxu0 %v283
        %289 = vmatpush.msra.mxu0 %v282
        %290 = vmatpush.msra.mxu0 %v281
        %291 = vmatpush.msra.mxu0 %v280
        %292 = vmatpush.msra.mxu0 %v279
        %293 = vmatpush.msra.mxu0 %v278
        %294 = vmatpush.msra.mxu0 %v277
        %295 = vmatpush.msra.mxu0 %v276
        %296 = vmatpush.msra.mxu0 %v275
        %297 = vmatpush.msra.mxu0 %v274
        %298 = vmatpush.msra.mxu0 %v273
        %299 = vmatpush.msra.mxu0 %v272
        %300 = vmatpush.msra.mxu0 %v271
        %301 = vmatpush.msra.mxu0 %v270
        %302 = vmatmul.f32.gmra.mxu0 %v254
        %v303 = vpop.f32.mrf.mxu0
        %v304 = vadd.f32 0.0, %v303
        %305 = vmatmul.f32.gmra.mxu0 %v255
        %v306 = vpop.f32.mrf.mxu0
        %v307 = vadd.f32 0.0, %v306
        %308 = vmatmul.f32.gmra.mxu0 %v256
        %v309 = vpop.f32.mrf.mxu0
        %v310 = vadd.f32 0.0, %v309
        %311 = vmatmul.f32.gmra.mxu0 %v257
        %v312 = vpop.f32.mrf.mxu0
        %v313 = vadd.f32 0.0, %v312
        %314 = vmatmul.f32.gmra.mxu0 %v258
        %v315 = vpop.f32.mrf.mxu0
        %v316 = vadd.f32 0.0, %v315
        %317 = vmatmul.f32.gmra.mxu0 %v259
        %v318 = vpop.f32.mrf.mxu0
        %v319 = vadd.f32 0.0, %v318
        %320 = vmatmul.f32.gmra.mxu0 %v260
        %v321 = vpop.f32.mrf.mxu0
        %v322 = vadd.f32 0.0, %v321
        %323 = vmatmul.f32.gmra.mxu0 %v261
        %v324 = vpop.f32.mrf.mxu0
        %v325 = vadd.f32 0.0, %v324
        %326 = vmatmul.f32.gmra.mxu0 %v262
        %v327 = vpop.f32.mrf.mxu0
        %v328 = vadd.f32 0.0, %v327
        %329 = vmatmul.f32.gmra.mxu0 %v263
        %v330 = vpop.f32.mrf.mxu0
        %v331 = vadd.f32 0.0, %v330
        %332 = vmatmul.f32.gmra.mxu0 %v264
        %v333 = vpop.f32.mrf.mxu0
        %v334 = vadd.f32 0.0, %v333
        %335 = vmatmul.f32.gmra.mxu0 %v265
        %v336 = vpop.f32.mrf.mxu0
        %v337 = vadd.f32 0.0, %v336
        %338 = vmatmul.f32.gmra.mxu0 %v266
        %v339 = vpop.f32.mrf.mxu0
        %v340 = vadd.f32 0.0, %v339
        %341 = vmatmul.f32.gmra.mxu0 %v267
        %v342 = vpop.f32.mrf.mxu0
        %v343 = vadd.f32 0.0, %v342
        %344 = vmatmul.f32.gmra.mxu0 %v268
        %v345 = vpop.f32.mrf.mxu0
        %v346 = vadd.f32 0.0, %v345
        %347 = vmatmul.f32.gmra.mxu0 %v269
        %v348 = vpop.f32.mrf.mxu0
        %v349 = vadd.f32 0.0, %v348
        %350 = vdwg.mxu0
        %v351 = vld [vmem:[#allocation6] sm:$0xff]
        %v352 = vld [vmem:[#allocation6 + $0x8] sm:$0xff]
        %v353 = vld [vmem:[#allocation6 + $0x10] sm:$0xff]
        %v354 = vld [vmem:[#allocation6 + $0x18] sm:$0xff]
        %v355 = vld [vmem:[#allocation6 + $0x20] sm:$0xff]
        %v356 = vld [vmem:[#allocation6 + $0x28] sm:$0xff]
        %v357 = vld [vmem:[#allocation6 + $0x30] sm:$0xff]
        %v358 = vld [vmem:[#allocation6 + $0x38] sm:$0xff]
        %v359 = vld [vmem:[#allocation6 + $0x40] sm:$0xff]
        %v360 = vld [vmem:[#allocation6 + $0x48] sm:$0xff]
        %v361 = vld [vmem:[#allocation6 + $0x50] sm:$0xff]
        %v362 = vld [vmem:[#allocation6 + $0x58] sm:$0xff]
        %v363 = vld [vmem:[#allocation6 + $0x60] sm:$0xff]
        %v364 = vld [vmem:[#allocation6 + $0x68] sm:$0xff]
        %v365 = vld [vmem:[#allocation6 + $0x70] sm:$0xff]
        %v366 = vld [vmem:[#allocation6 + $0x78] sm:$0xff]
        %v367 = vld [vmem:[#allocation6 + $0x80] sm:$0xff]
        %v368 = vld [vmem:[#allocation6 + $0x88] sm:$0xff]
        %v369 = vld [vmem:[#allocation6 + $0x90] sm:$0xff]
        %v370 = vld [vmem:[#allocation6 + $0x98] sm:$0xff]
        %v371 = vld [vmem:[#allocation6 + $0xa0] sm:$0xff]
        %v372 = vld [vmem:[#allocation6 + $0xa8] sm:$0xff]
        %v373 = vld [vmem:[#allocation6 + $0xb0] sm:$0xff]
        %v374 = vld [vmem:[#allocation6 + $0xb8] sm:$0xff]
        %v375 = vld [vmem:[#allocation6 + $0xc0] sm:$0xff]
        %v376 = vld [vmem:[#allocation6 + $0xc8] sm:$0xff]
        %v377 = vld [vmem:[#allocation6 + $0xd0] sm:$0xff]
        %v378 = vld [vmem:[#allocation6 + $0xd8] sm:$0xff]
        %v379 = vld [vmem:[#allocation6 + $0xe0] sm:$0xff]
        %v380 = vld [vmem:[#allocation6 + $0xe8] sm:$0xff]
        %v381 = vld [vmem:[#allocation6 + $0xf0] sm:$0xff]
        %v382 = vld [vmem:[#allocation6 + $0xf8] sm:$0xff]
        %v383 = vadd.f32 %v351, %v352
        %v384 = vadd.f32 %v383, %v353
        %v385 = vadd.f32 %v384, %v354
        %v386 = vadd.f32 %v385, %v355
        %v387 = vadd.f32 %v386, %v356
        %v388 = vadd.f32 %v387, %v357
        %v389 = vadd.f32 %v388, %v358
        %v390 = vadd.f32 %v389, %v359
        %v391 = vadd.f32 %v390, %v360
        %v392 = vadd.f32 %v391, %v361
        %v393 = vadd.f32 %v392, %v362
        %v394 = vadd.f32 %v393, %v363
        %v395 = vadd.f32 %v394, %v364
        %v396 = vadd.f32 %v395, %v365
        %v397 = vadd.f32 %v396, %v366
        %v398 = vadd.f32 %v397, %v367
        %v399 = vadd.f32 %v398, %v368
        %v400 = vadd.f32 %v399, %v369
        %v401 = vadd.f32 %v400, %v370
        %v402 = vadd.f32 %v401, %v371
        %v403 = vadd.f32 %v402, %v372
        %v404 = vadd.f32 %v403, %v373
        %v405 = vadd.f32 %v404, %v374
        %v406 = vadd.f32 %v405, %v375
        %v407 = vadd.f32 %v406, %v376
        %v408 = vadd.f32 %v407, %v377
        %v409 = vadd.f32 %v408, %v378
        %v410 = vadd.f32 %v409, %v379
        %v411 = vadd.f32 %v410, %v380
        %v412 = vadd.f32 %v411, %v381
        %v413 = vadd.f32 %v412, %v382
        %414 = vadd.xlane.f32.xlu0 %v413
        %v415 = vpop.xlane.xlu0 %414
        %v416 = vrot.slane %v415, 4
        %v417 = vadd.f32 %v415, %v416
        %v418 = vrot.slane %v417, 2
        %v419 = vadd.f32 %v417, %v418
        %v420 = vrot.slane %v419, 1
        %v421 = vadd.f32 %v419, %v420
        %s422 = vtos %v421
        %v423 = vmul.f32 %v351, %v351
        %v424 = vmul.f32 %v352, %v352
        %v425 = vmul.f32 %v353, %v353
        %v426 = vmul.f32 %v354, %v354
        %v427 = vmul.f32 %v355, %v355
        %v428 = vmul.f32 %v356, %v356
        %v429 = vmul.f32 %v357, %v357
        %v430 = vmul.f32 %v358, %v358
        %v431 = vmul.f32 %v359, %v359
        %v432 = vmul.f32 %v360, %v360
        %v433 = vmul.f32 %v361, %v361
        %v434 = vmul.f32 %v362, %v362
        %v435 = vmul.f32 %v363, %v363
        %v436 = vmul.f32 %v364, %v364
        %v437 = vmul.f32 %v365, %v365
        %v438 = vmul.f32 %v366, %v366
        %v439 = vmul.f32 %v367, %v367
        %v440 = vmul.f32 %v368, %v368
        %v441 = vmul.f32 %v369, %v369
        %v442 = vmul.f32 %v370, %v370
        %v443 = vmul.f32 %v371, %v371
        %v444 = vmul.f32 %v372, %v372
        %v445 = vmul.f32 %v373, %v373
        %v446 = vmul.f32 %v374, %v374
        %v447 = vmul.f32 %v375, %v375
        %v448 = vmul.f32 %v376, %v376
        %v449 = vmul.f32 %v377, %v377
        %v450 = vmul.f32 %v378, %v378
        %v451 = vmul.f32 %v379, %v379
        %v452 = vmul.f32 %v380, %v380
        %v453 = vmul.f32 %v381, %v381
        %v454 = vmul.f32 %v382, %v382
        %v455 = vadd.f32 %v423, %v424
        %v456 = vadd.f32 %v455, %v425
        %v457 = vadd.f32 %v456, %v426
        %v458 = vadd.f32 %v457, %v427
        %v459 = vadd.f32 %v458, %v428
        %v460 = vadd.f32 %v459, %v429
        %v461 = vadd.f32 %v460, %v430
        %v462 = vadd.f32 %v461, %v431
        %v463 = vadd.f32 %v462, %v432
        %v464 = vadd.f32 %v463, %v433
        %v465 = vadd.f32 %v464, %v434
        %v466 = vadd.f32 %v465, %v435
        %v467 = vadd.f32 %v466, %v436
        %v468 = vadd.f32 %v467, %v437
        %v469 = vadd.f32 %v468, %v438
        %v470 = vadd.f32 %v469, %v439
        %v471 = vadd.f32 %v470, %v440
        %v472 = vadd.f32 %v471, %v441
        %v473 = vadd.f32 %v472, %v442
        %v474 = vadd.f32 %v473, %v443
        %v475 = vadd.f32 %v474, %v444
        %v476 = vadd.f32 %v475, %v445
        %v477 = vadd.f32 %v476, %v446
        %v478 = vadd.f32 %v477, %v447
        %v479 = vadd.f32 %v478, %v448
        %v480 = vadd.f32 %v479, %v449
        %v481 = vadd.f32 %v480, %v450
        %v482 = vadd.f32 %v481, %v451
        %v483 = vadd.f32 %v482, %v452
        %v484 = vadd.f32 %v483, %v453
        %v485 = vadd.f32 %v484, %v454
        %486 = vadd.xlane.f32.xlu0 %v485
        %v487 = vpop.xlane.xlu0 %486
        %v488 = vrot.slane %v487, 4
        %v489 = vadd.f32 %v487, %v488
        %v490 = vrot.slane %v489, 2
        %v491 = vadd.f32 %v489, %v490
        %v492 = vrot.slane %v491, 1
        %v493 = vadd.f32 %v491, %v492
        %s494 = vtos %v493
        %s495 = sld [smem:[#allocation2 + $0x3]]
        %s496 = smul.f32 %s422, %s495
        %s497 = smul.f32 %s494, %s495
        %s498 = smul.f32 %s496, %s496
        %s499 = ssub.f32 %s497, %s498
        %s500 = sld [smem:[#allocation2]]
        %s501 = sld [smem:[#allocation2 + $0x1]]
        %s502 = sld [smem:[#allocation2 + $0x2]]
        %s503 = sadd.f32 %s499, %s502
        %v504 = vstv %s503
        %v505 = vrsqrt.pop %v504
        %v506 = vmul.f32 %v505, %v504
        %v507 = vmul.f32 %v506, %v505
        %v508 = vmul.f32 0.5, %v507
        %v509 = vsub.f32 1.5, %v508
        %v510 = vmul.f32 %v505, %v509
        %vm511 = vweird.f32 %v504
        %vm512 = vweird.f32 %v505
        %vm513 = vmor %vm511, %vm512
        %v514 = vsel %vm513, %v505, %v510
        %s515 = vtos %v514
        %s516 = smul.f32 %s500, %s515
        %s517 = smul.f32 %s516, %s496
        %s518 = ssub.f32 %s501, %s517
        %v519 = vstv %s516
        %v520 = vmul.f32 %v519, %v304
        %v521 = vmul.f32 %v519, %v307
        %v522 = vmul.f32 %v519, %v310
        %v523 = vmul.f32 %v519, %v313
        %v524 = vmul.f32 %v519, %v316
        %v525 = vmul.f32 %v519, %v319
        %v526 = vmul.f32 %v519, %v322
        %v527 = vmul.f32 %v519, %v325
        %v528 = vmul.f32 %v519, %v328
        %v529 = vmul.f32 %v519, %v331
        %v530 = vmul.f32 %v519, %v334
        %v531 = vmul.f32 %v519, %v337
        %v532 = vmul.f32 %v519, %v340
        %v533 = vmul.f32 %v519, %v343
        %v534 = vmul.f32 %v519, %v346
        %v535 = vmul.f32 %v519, %v349
        %v536 = vld [vmem:[%s3] sm:$0x1]
        %v537 = vstv %s518
        %v538 = vmul.f32 %v537, %v536
        %v540 = vperm.slane %v538, 0
        %v542 = vadd.f32 %v520, %v540
        %v543 = vadd.f32 %v521, %v540
        %v544 = vadd.f32 %v522, %v540
        %v545 = vadd.f32 %v523, %v540
        %v546 = vadd.f32 %v524, %v540
        %v547 = vadd.f32 %v525, %v540
        %v548 = vadd.f32 %v526, %v540
        %v549 = vadd.f32 %v527, %v540
        %v550 = vadd.f32 %v528, %v540
        %v551 = vadd.f32 %v529, %v540
        %v552 = vadd.f32 %v530, %v540
        %v553 = vadd.f32 %v531, %v540
        %v554 = vadd.f32 %v532, %v540
        %v555 = vadd.f32 %v533, %v540
        %v556 = vadd.f32 %v534, %v540
        %v557 = vadd.f32 %v535, %v540
        %v558 = vld [vmem:[%s4] sm:$0x1]
        %v560 = vperm.slane %v558, 0
        %v562 = vadd.f32 %v542, %v560
        %v563 = vadd.f32 %v543, %v560
        %v564 = vadd.f32 %v544, %v560
        %v565 = vadd.f32 %v545, %v560
        %v566 = vadd.f32 %v546, %v560
        %v567 = vadd.f32 %v547, %v560
        %v568 = vadd.f32 %v548, %v560
        %v569 = vadd.f32 %v549, %v560
        %v570 = vadd.f32 %v550, %v560
        %v571 = vadd.f32 %v551, %v560
        %v572 = vadd.f32 %v552, %v560
        %v573 = vadd.f32 %v553, %v560
        %v574 = vadd.f32 %v554, %v560
        %v575 = vadd.f32 %v555, %v560
        %v576 = vadd.f32 %v556, %v560
        %v577 = vadd.f32 %v557, %v560
        %578 = vst [vmem:[%s250] sm:$0xff] %v562
        %579 = vst [vmem:[%s250 + $0x8] sm:$0xff] %v563
        %580 = vst [vmem:[%s250 + $0x10] sm:$0xff] %v564
        %581 = vst [vmem:[%s250 + $0x18] sm:$0xff] %v565
        %582 = vst [vmem:[%s250 + $0x20] sm:$0xff] %v566
        %583 = vst [vmem:[%s250 + $0x28] sm:$0xff] %v567
        %584 = vst [vmem:[%s250 + $0x30] sm:$0xff] %v568
        %585 = vst [vmem:[%s250 + $0x38] sm:$0xff] %v569
        %586 = vst [vmem:[%s250 + $0x40] sm:$0xff] %v570
        %587 = vst [vmem:[%s250 + $0x48] sm:$0xff] %v571
        %588 = vst [vmem:[%s250 + $0x50] sm:$0xff] %v572
        %589 = vst [vmem:[%s250 + $0x58] sm:$0xff] %v573
        %590 = vst [vmem:[%s250 + $0x60] sm:$0xff] %v574
        %591 = vst [vmem:[%s250 + $0x68] sm:$0xff] %v575
        %592 = vst [vmem:[%s250 + $0x70] sm:$0xff] %v576
        %593 = vst [vmem:[%s250 + $0x78] sm:$0xff] %v577
        %s594 = sand.u32 %s135, 1
        %s595 = scalar_lea.sflag [#allocation4], %s594
        %s596 = sand.u32 %s135, 1
        %s597 = smul.addr %s596, 128
        %s598 = scalar_lea.vmem [#allocation9], %s597
        // Predicated region
        $region53: #{tpu_custom_call.1} parent=39 // pred_check
          %p599 = pneg %p145
        $region54: #{tpu_custom_call.1} parent=39 // pred_check_branch
          %601 = sbr.rel (%p599) target = $region56
        $region55: #{tpu_custom_call.1} parent=39 // pred_region
          %s602 = smul.u32 16, %s22
          %604 = vsyncadd %s595, 0
          %s605 = smul.addr %s602, 8
          %s606 = scalar_lea.hbm %s5, %s605
          %s607 = sshll.u32 %s598, 4
          %s608 = int_to_ptr.vmem [resolvable:$true] %s607
          %s609 = sshll.u32 %s606, 4
          %s610 = int_to_ptr.hbm [resolvable:$true] %s609
          %615 = dma.vmem_to_hbm [thread:$0]  %s608, 2048, %s610, %s595, 128, 128, 8
        $region56: #{tpu_custom_call.1} parent=39 // pred_fallthru
          _
      $region40: #{tpu_custom_call.1} parent=5 // pred_fallthru
        _
      %p616 = scmp.le.s32.totalorder 2, %s17
      // Predicated region
      $region57: #{tpu_custom_call.1} parent=5 // pred_check
        %p617 = pneg %p616
      $region58: #{tpu_custom_call.1} parent=5 // pred_check_branch
        %619 = sbr.rel (%p617) target = $region60
      $region59: #{tpu_custom_call.1} parent=5 // pred_region
        %s620 = ssub.s32 %s17, 2
        // Predicated region
        $region61: #{tpu_custom_call.1} parent=59 // pred_check
          %p621 = pneg %p151
        $region62: #{tpu_custom_call.1} parent=59 // pred_check_branch
          %623 = sbr.rel (%p621) target = $region64
        $region63: #{tpu_custom_call.1} parent=59 // pred_region
          %s624 = sand.u32 %s136, 1
          %s625 = scalar_lea.sflag [#allocation4], %s624
          %s626 = sand.u32 %s136, 1
          %s627 = smul.addr %s626, 128
          %s628 = scalar_lea.vmem [#allocation9], %s627
          %630 = dma.done %s625, 2048
        $region64: #{tpu_custom_call.1} parent=59 // pred_fallthru
          _
      $region60: #{tpu_custom_call.1} parent=5 // pred_fallthru
        _
    $region6: #{tpu_custom_call.1} parent=1 // loop_footer
      %s21 = sadd.s32 1, %s17
    $region7: #{tpu_custom_call.1} parent=1 // loop_footer_branch
      %16 = sbr.rel target = $region3
    $region8: #{tpu_custom_call.1} parent=1 // loop_exit
      _
    %631 = vsyncpa [#allocation3], 1
    %s632 = scalar_lea.sflag [#allocation3], 1
    %633 = vsyncpa %s632, 1
    %634 = vsyncpa [#allocation8], 1
    %635 = vsyncpa [#allocation4], 1
    %s636 = scalar_lea.sflag [#allocation4], 1
    %637 = vsyncpa %s636, 1
    %638 = vsyncpa [#allocation5], 1
    %s639 = scalar_lea.sflag [#allocation5], 1
    %640 = vsyncpa %s639, 1

</llo_original>
